<compile_context>
chip_gen: v7x
topology: tpu7x:2x2x1
jax: 0.10.0
libtpu: 0.0.40
codegen_flags: <defaults>
</compile_context>

<pallas_src>
import functools

import jax
import jax.numpy as jnp
from jax.experimental import pallas as pl
from jax.experimental.pallas import tpu as pltpu

_LANE = 128


def _tversky_partial_kernel(logits_ref, labels_ref, out_ref,
                            acc_tp, acc_sp, acc_sg, *, mask_pad):
    # logits_ref: (C, ts, 128) any float dtype ; labels_ref: (ts, 128) i32
    # out_ref:    (3, C, 128) f32 per-sample partials [tp, sum_p, sum_g]
    # acc_*:      (C, ts, 128) f32 VMEM accumulators (persist across r steps)
    r = pl.program_id(1)

    @pl.when(r == 0)
    def _():
        acc_tp[...] = jnp.zeros_like(acc_tp)
        acc_sp[...] = jnp.zeros_like(acc_sp)
        acc_sg[...] = jnp.zeros_like(acc_sg)

    x = logits_ref[...].astype(jnp.float32)            # (C, ts, 128)

    # Softmax over the channel axis (leading, non-vreg axis): the reductions
    # are plain elementwise VPU work on full (ts, 128) tiles; exp + recip on EUP.
    m = jnp.max(x, axis=0, keepdims=True)
    e = jnp.exp(x - m)
    denom = jnp.sum(e, axis=0, keepdims=True)
    p = e * pl.reciprocal(denom, approx=True)          # (C, ts, 128)

    labels = labels_ref[...]                           # (ts, 128) i32
    ids = jax.lax.broadcasted_iota(jnp.int32, p.shape, 0)
    g = (labels[None, :, :] == ids).astype(jnp.float32)  # one-hot (C, ts, 128)

    acc_tp[...] += p * g
    acc_sg[...] += g
    if mask_pad:
        # Padded pixels carry label -1: g is already zero there, so only the
        # per-class sum of p needs masking.
        valid = (labels >= 0).astype(jnp.float32)
        acc_sp[...] += p * valid[None, :, :]
    else:
        acc_sp[...] += p

    @pl.when(r == pl.num_programs(1) - 1)
    def _():
        # Reduce over sublanes once per sample; lane reduction finishes in JAX.
        out_ref[0, :, :] = jnp.sum(acc_tp[...], axis=1)    # (C, 128)
        out_ref[1, :, :] = jnp.sum(acc_sp[...], axis=1)
        out_ref[2, :, :] = jnp.sum(acc_sg[...], axis=1)


def _pick_row_tile(num_rows, cap):
    """Largest legal sublane tile: <= cap rows, a multiple of 8 (or the full
    extent) and dividing num_rows exactly so every grid block is full."""
    if num_rows <= cap:
        return num_rows
    best = 0
    for ts in range(8, cap + 1, 8):
        if num_rows % ts == 0:
            best = ts
    return best if best else num_rows


def tversky_loss(y_pred, y_true, classes, alpha=0.7, beta=0.3,
                 row_tile_cap=256):
    N, C, H, W = y_pred.shape
    assert C == classes
    S = H * W
    S_pad = pl.cdiv(S, _LANE) * _LANE
    mask_pad = S_pad != S

    # Pure reshapes of the contiguous NCHW tensor: no HBM transpose, no cast
    # (kernel casts to f32 in VMEM, so bf16 inputs also stream at half traffic).
    logits = y_pred.reshape(N, C, S)
    labels = y_true.astype(jnp.int32).reshape(N, S)
    if mask_pad:  # only copies when H*W is not a multiple of 128
        logits = jnp.pad(logits, ((0, 0), (0, 0), (0, S_pad - S)))
        labels = jnp.pad(labels, ((0, 0), (0, S_pad - S)), constant_values=-1)

    R = S_pad // _LANE
    logits = logits.reshape(N, C, R, _LANE)
    labels = labels.reshape(N, R, _LANE)

    ts = _pick_row_tile(R, row_tile_cap)           # up to 256*128 = 32768 px/tile
    grid = (N, R // ts)

    kernel = functools.partial(_tversky_partial_kernel, mask_pad=mask_pad)

    partials = pl.pallas_call(
        kernel,
        out_shape=jax.ShapeDtypeStruct((N, 3, C, _LANE), jnp.float32),
        grid_spec=pltpu.PrefetchScalarGridSpec(
            num_scalar_prefetch=0,
            grid=grid,
            in_specs=[
                pl.BlockSpec((None, C, ts, _LANE), lambda n, r: (n, 0, r, 0)),
                pl.BlockSpec((None, ts, _LANE), lambda n, r: (n, r, 0)),
            ],
            out_specs=pl.BlockSpec((None, 3, C, _LANE),
                                   lambda n, r: (n, 0, 0, 0)),
            scratch_shapes=[pltpu.VMEM((C, ts, _LANE), jnp.float32)] * 3,
        ),
        compiler_params=pltpu.CompilerParams(
            dimension_semantics=("parallel", "arbitrary"),
            vmem_limit_bytes=32 * 1024 * 1024,
        ),
    )(logits, labels)

    sums = jnp.sum(partials, axis=(0, 3))          # (3, C): tp, sum_p, sum_g
    tp, sp, sg = sums[0], sums[1], sums[2]
    fp = alpha * (sp - tp)                         # alpha * sum(p_i * (1 - g_i))
    fn = beta * (sg - tp)                          # beta  * sum((1 - p_i) * g_i)
    result = tp / (tp + fp + fn + 1e-5)
    loss = jnp.sum(result[1:])                     # classes 1..C-1 (skip background)
    return 1.0 - loss / classes


def _reference(y_pred, y_true, classes, alpha=0.7, beta=0.3):
    p = jax.nn.softmax(y_pred.astype(jnp.float32), axis=1)
    g = jax.nn.one_hot(y_true, classes, axis=1, dtype=jnp.float32)
    loss = 0.0
    for i in range(1, classes):
        p0 = p[:, i]
        g0 = g[:, i]
        tp = jnp.sum(p0 * g0)
        fp = alpha * jnp.sum(p0 * (1.0 - g0))
        fn = beta * jnp.sum((1.0 - p0) * g0)
        loss = loss + tp / (tp + fp + fn + 1e-5)
    return 1.0 - loss / classes


if __name__ == "__main__":
    key = jax.random.PRNGKey(0)
    k1, k2 = jax.random.split(key)

    N, C, H, W = 2, 4, 16, 16
    y_pred = jax.random.normal(k1, (N, C, H, W), jnp.float32)
    y_true = jax.random.randint(k2, (N, H, W), 0, C, dtype=jnp.int32)

    out = tversky_loss(y_pred, y_true, classes=C)
    out = jax.block_until_ready(out)

    ref = jax.block_until_ready(_reference(y_pred, y_true, C))
    # Tolerance slightly looser than 1e-4 to allow for the approx EUP
    # reciprocal in the softmax; still catches any semantic error.
    assert abs(float(out) - float(ref)) < 1e-3, (float(out), float(ref))

    print("KERNEL_OK")
</pallas_src>

<mosaic_0001>
module attributes {stable_mosaic.version = 11 : i64} {
  func.func @_tversky_partial_kernel(%arg0: i32, %arg1: i32, %arg2: memref<1x4x2x128xf32, #tpu.memory_space<vmem>>, %arg3: memref<1x2x128xi32, #tpu.memory_space<vmem>>, %arg4: memref<1x3x4x128xf32, #tpu.memory_space<vmem>>, %arg5: memref<4x2x128xf32, #tpu.memory_space<vmem>>, %arg6: memref<4x2x128xf32, #tpu.memory_space<vmem>>, %arg7: memref<4x2x128xf32, #tpu.memory_space<vmem>>) attributes {dimension_semantics = [#tpu.dimension_semantics<parallel>, #tpu.dimension_semantics<arbitrary>], iteration_bounds = array<i64: 2, 1>, scalar_prefetch = 0 : i64, scratch_operands = 3 : i64, tpu.core_type = #tpu.core_type<tc>, window_params = [{transform_indices = @transform_0, window_bounds = array<i64: 1, 4, 2, 128>}, {transform_indices = @transform_1, window_bounds = array<i64: 1, 2, 128>}, {transform_indices = @transform_2, window_bounds = array<i64: 1, 3, 4, 128>}]} {
    %c0_i32 = arith.constant 0 : i32
    %0 = arith.cmpi eq, %arg1, %c0_i32 : i32
    %1 = arith.extui %0 : i1 to i32
    %c0_i32_0 = arith.constant 0 : i32
    %2 = arith.cmpi ne, %1, %c0_i32_0 : i32
    scf.if %2 {
      %cst_28 = arith.constant 0.000000e+00 : f32
      %36 = vector.broadcast %cst_28 : f32 to vector<4x2x128xf32>
      %c0_29 = arith.constant 0 : index
      %c0_30 = arith.constant 0 : index
      %c0_31 = arith.constant 0 : index
      %37 = vector.load %arg5[%c0_29, %c0_30, %c0_31] : memref<4x2x128xf32, #tpu.memory_space<vmem>>, vector<4x2x128xf32>
      tpu.vector_store %arg5[%c0_29, %c0_30, %c0_31], %36 {strides = array<i32>} : memref<4x2x128xf32, #tpu.memory_space<vmem>>, vector<4x2x128xf32>,
      %cst_32 = arith.constant 0.000000e+00 : f32
      %38 = vector.broadcast %cst_32 : f32 to vector<4x2x128xf32>
      %c0_33 = arith.constant 0 : index
      %c0_34 = arith.constant 0 : index
      %c0_35 = arith.constant 0 : index
      %39 = vector.load %arg6[%c0_33, %c0_34, %c0_35] : memref<4x2x128xf32, #tpu.memory_space<vmem>>, vector<4x2x128xf32>
      tpu.vector_store %arg6[%c0_33, %c0_34, %c0_35], %38 {strides = array<i32>} : memref<4x2x128xf32, #tpu.memory_space<vmem>>, vector<4x2x128xf32>,
      %cst_36 = arith.constant 0.000000e+00 : f32
      %40 = vector.broadcast %cst_36 : f32 to vector<4x2x128xf32>
      %c0_37 = arith.constant 0 : index
      %c0_38 = arith.constant 0 : index
      %c0_39 = arith.constant 0 : index
      %41 = vector.load %arg7[%c0_37, %c0_38, %c0_39] : memref<4x2x128xf32, #tpu.memory_space<vmem>>, vector<4x2x128xf32>
      tpu.vector_store %arg7[%c0_37, %c0_38, %c0_39], %40 {strides = array<i32>} : memref<4x2x128xf32, #tpu.memory_space<vmem>>, vector<4x2x128xf32>,
    } else {
    }
    %c0 = arith.constant 0 : index
    %c0_1 = arith.constant 0 : index
    %c0_2 = arith.constant 0 : index
    %c0_3 = arith.constant 0 : index
    %3 = vector.load %arg2[%c0, %c0_1, %c0_2, %c0_3] : memref<1x4x2x128xf32, #tpu.memory_space<vmem>>, vector<1x4x2x128xf32>
    %4 = vector.shape_cast %3 : vector<1x4x2x128xf32> to vector<4x2x128xf32>
    %cst = arith.constant dense<0xFF800000> : vector<2x128xf32>
    %5 = vector.multi_reduction <maximumf>, %4, %cst [0] : vector<4x2x128xf32> to vector<2x128xf32>
    %6 = vector.shape_cast %5 : vector<2x128xf32> to vector<1x2x128xf32>
    %7 = vector.broadcast %6 : vector<1x2x128xf32> to vector<4x2x128xf32>
    %8 = arith.subf %4, %7 : vector<4x2x128xf32>
    %9 = math.exp %8 : vector<4x2x128xf32>
    %cst_4 = arith.constant dense<0.000000e+00> : vector<2x128xf32>
    %10 = vector.multi_reduction <add>, %9, %cst_4 [0] : vector<4x2x128xf32> to vector<2x128xf32>
    %11 = vector.shape_cast %10 : vector<2x128xf32> to vector<1x2x128xf32>
    %12 = tpu.reciprocal %11 {approx = true} : vector<1x2x128xf32> -> vector<1x2x128xf32>
    %13 = vector.broadcast %12 : vector<1x2x128xf32> to vector<4x2x128xf32>
    %14 = arith.mulf %9, %13 : vector<4x2x128xf32>
    %c0_5 = arith.constant 0 : index
    %c0_6 = arith.constant 0 : index
    %c0_7 = arith.constant 0 : index
    %15 = vector.load %arg3[%c0_5, %c0_6, %c0_7] : memref<1x2x128xi32, #tpu.memory_space<vmem>>, vector<1x2x128xi32>
    %16 = vector.shape_cast %15 : vector<1x2x128xi32> to vector<2x128xi32>
    %17 = tpu.iota {dimensions = array<i32: 0>} : vector<4x2x128xi32>
    %18 = vector.shape_cast %16 : vector<2x128xi32> to vector<1x2x128xi32>
    %19 = vector.broadcast %18 : vector<1x2x128xi32> to vector<4x2x128xi32>
    %20 = arith.cmpi eq, %19, %17 : vector<4x2x128xi32>
    %21 = arith.extui %20 : vector<4x2x128xi1> to vector<4x2x128xi32>
    %22 = arith.sitofp %21 : vector<4x2x128xi32> to vector<4x2x128xf32>
    %c0_8 = arith.constant 0 : index
    %c0_9 = arith.constant 0 : index
    %c0_10 = arith.constant 0 : index
    %23 = vector.load %arg5[%c0_8, %c0_9, %c0_10] : memref<4x2x128xf32, #tpu.memory_space<vmem>>, vector<4x2x128xf32>
    %24 = arith.mulf %14, %22 : vector<4x2x128xf32>
    %25 = arith.addf %23, %24 : vector<4x2x128xf32>
    %c0_11 = arith.constant 0 : index
    %c0_12 = arith.constant 0 : index
    %c0_13 = arith.constant 0 : index
    %26 = vector.load %arg5[%c0_11, %c0_12, %c0_13] : memref<4x2x128xf32, #tpu.memory_space<vmem>>, vector<4x2x128xf32>
    tpu.vector_store %arg5[%c0_11, %c0_12, %c0_13], %25 {strides = array<i32>} : memref<4x2x128xf32, #tpu.memory_space<vmem>>, vector<4x2x128xf32>,
    %c0_14 = arith.constant 0 : index
    %c0_15 = arith.constant 0 : index
    %c0_16 = arith.constant 0 : index
    %27 = vector.load %arg7[%c0_14, %c0_15, %c0_16] : memref<4x2x128xf32, #tpu.memory_space<vmem>>, vector<4x2x128xf32>
    %28 = arith.addf %27, %22 : vector<4x2x128xf32>
    %c0_17 = arith.constant 0 : index
    %c0_18 = arith.constant 0 : index
    %c0_19 = arith.constant 0 : index
    %29 = vector.load %arg7[%c0_17, %c0_18, %c0_19] : memref<4x2x128xf32, #tpu.memory_space<vmem>>, vector<4x2x128xf32>
    tpu.vector_store %arg7[%c0_17, %c0_18, %c0_19], %28 {strides = array<i32>} : memref<4x2x128xf32, #tpu.memory_space<vmem>>, vector<4x2x128xf32>,
    %c0_20 = arith.constant 0 : index
    %c0_21 = arith.constant 0 : index
    %c0_22 = arith.constant 0 : index
    %30 = vector.load %arg6[%c0_20, %c0_21, %c0_22] : memref<4x2x128xf32, #tpu.memory_space<vmem>>, vector<4x2x128xf32>
    %31 = arith.addf %30, %14 : vector<4x2x128xf32>
    %c0_23 = arith.constant 0 : index
    %c0_24 = arith.constant 0 : index
    %c0_25 = arith.constant 0 : index
    %32 = vector.load %arg6[%c0_23, %c0_24, %c0_25] : memref<4x2x128xf32, #tpu.memory_space<vmem>>, vector<4x2x128xf32>
    tpu.vector_store %arg6[%c0_23, %c0_24, %c0_25], %31 {strides = array<i32>} : memref<4x2x128xf32, #tpu.memory_space<vmem>>, vector<4x2x128xf32>,
    %c0_i32_26 = arith.constant 0 : i32
    %33 = arith.cmpi eq, %arg1, %c0_i32_26 : i32
    %34 = arith.extui %33 : i1 to i32
    %c0_i32_27 = arith.constant 0 : i32
    %35 = arith.cmpi ne, %34, %c0_i32_27 : i32
    scf.if %35 {
      %c0_28 = arith.constant 0 : index
      %c0_29 = arith.constant 0 : index
      %c0_30 = arith.constant 0 : index
      %36 = vector.load %arg5[%c0_28, %c0_29, %c0_30] : memref<4x2x128xf32, #tpu.memory_space<vmem>>, vector<4x2x128xf32>
      %cst_31 = arith.constant dense<0.000000e+00> : vector<4x128xf32>
      %37 = vector.multi_reduction <add>, %36, %cst_31 [1] : vector<4x2x128xf32> to vector<4x128xf32>
      %c0_32 = arith.constant 0 : index
      %c0_33 = arith.constant 0 : index
      %c0_34 = arith.constant 0 : index
      %c0_35 = arith.constant 0 : index
      %38 = vector.load %arg4[%c0_32, %c0_33, %c0_34, %c0_35] : memref<1x3x4x128xf32, #tpu.memory_space<vmem>>, vector<1x1x4x128xf32>
      %39 = vector.shape_cast %38 : vector<1x1x4x128xf32> to vector<4x128xf32>
      %40 = vector.shape_cast %37 : vector<4x128xf32> to vector<1x1x4x128xf32>
      tpu.vector_store %arg4[%c0_32, %c0_33, %c0_34, %c0_35], %40 {strides = array<i32>} : memref<1x3x4x128xf32, #tpu.memory_space<vmem>>, vector<1x1x4x128xf32>,
      %c0_36 = arith.constant 0 : index
      %c0_37 = arith.constant 0 : index
      %c0_38 = arith.constant 0 : index
      %41 = vector.load %arg6[%c0_36, %c0_37, %c0_38] : memref<4x2x128xf32, #tpu.memory_space<vmem>>, vector<4x2x128xf32>
      %cst_39 = arith.constant dense<0.000000e+00> : vector<4x128xf32>
      %42 = vector.multi_reduction <add>, %41, %cst_39 [1] : vector<4x2x128xf32> to vector<4x128xf32>
      %c0_40 = arith.constant 0 : index
      %c1 = arith.constant 1 : index
      %c0_41 = arith.constant 0 : index
      %c0_42 = arith.constant 0 : index
      %43 = vector.load %arg4[%c0_40, %c1, %c0_41, %c0_42] : memref<1x3x4x128xf32, #tpu.memory_space<vmem>>, vector<1x1x4x128xf32>
      %44 = vector.shape_cast %43 : vector<1x1x4x128xf32> to vector<4x128xf32>
      %45 = vector.shape_cast %42 : vector<4x128xf32> to vector<1x1x4x128xf32>
      tpu.vector_store %arg4[%c0_40, %c1, %c0_41, %c0_42], %45 {strides = array<i32>} : memref<1x3x4x128xf32, #tpu.memory_space<vmem>>, vector<1x1x4x128xf32>,
      %c0_43 = arith.constant 0 : index
      %c0_44 = arith.constant 0 : index
      %c0_45 = arith.constant 0 : index
      %46 = vector.load %arg7[%c0_43, %c0_44, %c0_45] : memref<4x2x128xf32, #tpu.memory_space<vmem>>, vector<4x2x128xf32>
      %cst_46 = arith.constant dense<0.000000e+00> : vector<4x128xf32>
      %47 = vector.multi_reduction <add>, %46, %cst_46 [1] : vector<4x2x128xf32> to vector<4x128xf32>
      %c0_47 = arith.constant 0 : index
      %c2 = arith.constant 2 : index
      %c0_48 = arith.constant 0 : index
      %c0_49 = arith.constant 0 : index
      %48 = vector.load %arg4[%c0_47, %c2, %c0_48, %c0_49] : memref<1x3x4x128xf32, #tpu.memory_space<vmem>>, vector<1x1x4x128xf32>
      %49 = vector.shape_cast %48 : vector<1x1x4x128xf32> to vector<4x128xf32>
      %50 = vector.shape_cast %47 : vector<4x128xf32> to vector<1x1x4x128xf32>
      tpu.vector_store %arg4[%c0_47, %c2, %c0_48, %c0_49], %50 {strides = array<i32>} : memref<1x3x4x128xf32, #tpu.memory_space<vmem>>, vector<1x1x4x128xf32>,
    } else {
    }
    return
  }
  func.func @transform_0(%arg0: i32, %arg1: i32) -> (i32, i32, i32, i32) {
    %c0_i32 = arith.constant 0 : i32
    %c0_i32_0 = arith.constant 0 : i32
    %c0_i32_1 = arith.constant 0 : i32
    return %arg0, %c0_i32, %arg1, %c0_i32_0 : i32, i32, i32, i32
  }
  func.func @transform_1(%arg0: i32, %arg1: i32) -> (i32, i32, i32) {
    %c0_i32 = arith.constant 0 : i32
    %c0_i32_0 = arith.constant 0 : i32
    return %arg0, %arg1, %c0_i32 : i32, i32, i32
  }
  func.func @transform_2(%arg0: i32, %arg1: i32) -> (i32, i32, i32, i32) {
    %c0_i32 = arith.constant 0 : i32
    %c0_i32_0 = arith.constant 0 : i32
    %c0_i32_1 = arith.constant 0 : i32
    %c0_i32_2 = arith.constant 0 : i32
    return %arg0, %c0_i32, %c0_i32_0, %c0_i32_1 : i32, i32, i32, i32
  }
}

</mosaic_0001>

<llo_original>
// kernel: tpu_custom_call.1
$region0: #{tpu_custom_call.1}
  #allocation0 [shape = 'u32[]', space=smem, size = 0x4, offset = 0x4, fixed_abs, tag = 'smem constant byte address 0x4 - core index']
  #allocation1 [shape = 'u32[144,128]{1,0:T(1,128)}', space=vmem, size = 0x12000, scoped, tag = 'internal scratch']
  #allocation2 [shape = 'f32[4,2,128]{2,1,0:T(2,128)}', space=vmem, size = 0x1000, scoped, tag = 'scratch operand']
  #allocation3 [shape = 'f32[4,2,128]{2,1,0:T(2,128)}', space=vmem, size = 0x1000, scoped, tag = 'scratch operand']
  #allocation4 [shape = 'f32[4,2,128]{2,1,0:T(2,128)}', space=vmem, size = 0x1000, scoped, tag = 'scratch operand']
  %s0 = inlined_call_operand.hbm [shape: f32[2,4,2,128], index: 0, kind: input, shape index: {}]
  %s1 = inlined_call_operand.hbm [shape: s32[2,2,128], index: 1, kind: input, shape index: {}]
  %s2 = inlined_call_operand.hbm [shape: f32[2,3,4,128], index: 2, kind: output, shape index: {}]
  %s3 = sld [smem:[#allocation0]]
  $region57: #{tpu_custom_call.1} parent=0
    _
  %s5 = ssub.s32 1, %s3
  %s6 = scalar_select 0, %s5, %s3
  $region1: #{tpu_custom_call.1} parent=0
    #allocation5 [shape = 'u8[8192]{0}', space=vmem, size = 0x2000, scoped, tag = 'input window, operand 0']
    #allocation6 [shape = 's32[2]{0}', space=sflag, size = 0x8, scoped, tag = 'scoped memory for tpu_custom_call.1']
    #allocation7 [shape = 's32[2]{0}', space=sflag, size = 0x8, scoped, tag = 'scoped memory for tpu_custom_call.1']
    #allocation8 [shape = 'u8[2048]{0}', space=vmem, size = 0x800, scoped, tag = 'input window, operand 1']
    #allocation9 [shape = 's32[2]{0}', space=sflag, size = 0x8, scoped, tag = 'scoped memory for tpu_custom_call.1']
    #allocation10 [shape = 'u8[12288]{0}', space=vmem, size = 0x3000, scoped, tag = 'output window, operand 0']
    %7 = vsyncpa [#allocation6], 0
    %s8 = scalar_lea.sflag [#allocation6], 1
    %9 = vsyncpa %s8, 0
    %10 = vsyncpa [#allocation9], 0
    %s11 = scalar_lea.sflag [#allocation9], 1
    %12 = vsyncpa %s11, 0
    %13 = vsyncpa [#allocation7], 0
    %s14 = scalar_lea.sflag [#allocation7], 1
    %15 = vsyncpa %s14, 0
    loop: start=0, step=1, limit=4
    $region2: #{tpu_custom_call.1} parent=1 // loop_pre_header
      _
    $region3: #{tpu_custom_call.1} parent=1 // loop_header
      %s17 = sphi 0, %s21
      %p18 = scmp.ge.s32.totalorder %s17, 4
      %s24 = sphi 0, %s36
      %s25 = sphi 0, %s32
      %s26 = sphi 0, %s24
      %s27 = sphi 0, %s25
      %s28 = sphi 0, %s26
      %s29 = sphi 0, %s27
      %s41 = sphi 0, %s43
      %s44 = sphi 0, %s41
      %s45 = sphi 0, %s44
      %s61 = sphi 0, %s45
      %s69 = sphi 0, %s71
      %s72 = sphi 0, %s69
      %s73 = sphi 0, %s72
      %s89 = sphi 0, %s73
      %s95 = sphi 0, %s97
      %s98 = sphi 0, %s95
      %s99 = sphi 0, %s98
      %s115 = sphi 0, %s99
    $region4: #{tpu_custom_call.1} parent=1 // loop_header_branch
      %20 = sbr.rel (%p18) target = $region8
    $region5: #{tpu_custom_call.1} parent=1 // loop_body
      %s22 = ssub.s32 %s17, 1
      %s23 = ssub.s32 %s17, 2
      %s30 = sadd.s32 1, %s25
      %p31 = scmp.ge.s32.totalorder %s30, 1
      %s32 = scalar_select %p31, 0, %s30
      %s33 = sadd.s32 1, %s24
      %s34 = scalar_select %p31, %s33, %s24
      %p35 = scmp.ge.s32.totalorder %s34, 2
      %s36 = scalar_select %p35, 0, %s34
      %s37 = ssub.s32 %s24, %s36
      %s38 = ssub.s32 %s25, %s32
      %s39 = sor.u32 %s37, %s38
      %p40 = scmp.eq.s32.totalorder %s39, 0
      %s42 = sadd.s32 %s41, 1
      %s43 = scalar_select %p40, %s41, %s42
      %p46 = pneg %p40
      %p47 = scmp.eq.s32.totalorder %s17, 1
      %p48 = por %p46, %p47
      %p49 = scmp.ne.s32.totalorder %s41, %s44
      %p50 = scmp.eq.s32.totalorder %s17, 0
      %p51 = por %p49, %p50
      %p52 = scmp.ne.s32.totalorder %s41, %s44
      %p53 = scmp.eq.s32.totalorder %s22, 1
      %p54 = por %p52, %p53
      %p55 = scmp.ne.s32.totalorder %s44, %s45
      %p56 = scmp.eq.s32.totalorder %s22, 0
      %p57 = por %p55, %p56
      %p58 = scmp.ne.s32.totalorder %s44, %s45
      %p59 = scmp.eq.s32.totalorder %s23, 1
      %p60 = por %p58, %p59
      %p62 = scmp.ne.s32.totalorder %s45, %s61
      %p63 = scmp.eq.s32.totalorder %s23, 0
      %p64 = por %p62, %p63
      %s65 = ssub.s32 %s24, %s36
      %s66 = ssub.s32 %s25, %s32
      %s67 = sor.u32 %s65, %s66
      %p68 = scmp.eq.s32.totalorder %s67, 0
      %s70 = sadd.s32 %s69, 1
      %s71 = scalar_select %p68, %s69, %s70
      %p74 = pneg %p68
      %p75 = scmp.eq.s32.totalorder %s17, 1
      %p76 = por %p74, %p75
      %p77 = scmp.ne.s32.totalorder %s69, %s72
      %p78 = scmp.eq.s32.totalorder %s17, 0
      %p79 = por %p77, %p78
      %p80 = scmp.ne.s32.totalorder %s69, %s72
      %p81 = scmp.eq.s32.totalorder %s22, 1
      %p82 = por %p80, %p81
      %p83 = scmp.ne.s32.totalorder %s72, %s73
      %p84 = scmp.eq.s32.totalorder %s22, 0
      %p85 = por %p83, %p84
      %p86 = scmp.ne.s32.totalorder %s72, %s73
      %p87 = scmp.eq.s32.totalorder %s23, 1
      %p88 = por %p86, %p87
      %p90 = scmp.ne.s32.totalorder %s73, %s89
      %p91 = scmp.eq.s32.totalorder %s23, 0
      %p92 = por %p90, %p91
      %s93 = ssub.s32 %s24, %s36
      %p94 = scmp.eq.s32.totalorder %s93, 0
      %s96 = sadd.s32 %s95, 1
      %s97 = scalar_select %p94, %s95, %s96
      %p100 = pneg %p94
      %p101 = scmp.eq.s32.totalorder %s17, 1
      %p102 = por %p100, %p101
      %p103 = scmp.ne.s32.totalorder %s95, %s98
      %p104 = scmp.eq.s32.totalorder %s17, 0
      %p105 = por %p103, %p104
      %p106 = scmp.ne.s32.totalorder %s95, %s98
      %p107 = scmp.eq.s32.totalorder %s22, 1
      %p108 = por %p106, %p107
      %p109 = scmp.ne.s32.totalorder %s98, %s99
      %p110 = scmp.eq.s32.totalorder %s22, 0
      %p111 = por %p109, %p110
      %p112 = scmp.ne.s32.totalorder %s98, %s99
      %p113 = scmp.eq.s32.totalorder %s23, 1
      %p114 = por %p112, %p113
      %p116 = scmp.ne.s32.totalorder %s99, %s115
      %p117 = scmp.eq.s32.totalorder %s23, 0
      %p118 = por %p116, %p117
      %p119 = scmp.le.s32.totalorder 1, %s17
      %p120 = scmp.lt.s32.totalorder %s17, 3
      %p121 = pnand %p119, %p120
      %p122 = pneg %p121
      // Predicated region
      $region9: #{tpu_custom_call.1} parent=5 // pred_check
        _
      $region10: #{tpu_custom_call.1} parent=5 // pred_check_branch
        %124 = sbr.rel (%p121) target = $region12
      $region11: #{tpu_custom_call.1} parent=5 // pred_region
        %s125 = ssub.s32 %s17, 1
      $region12: #{tpu_custom_call.1} parent=5 // pred_fallthru
        _
      %p126 = scmp.lt.s32.totalorder %s17, 2
      // Predicated region
      $region13: #{tpu_custom_call.1} parent=5 // pred_check
        %p127 = pneg %p126
      $region14: #{tpu_custom_call.1} parent=5 // pred_check_branch
        %129 = sbr.rel (%p127) target = $region16
      $region15: #{tpu_custom_call.1} parent=5 // pred_region
        // Predicated region
        $region17: #{tpu_custom_call.1} parent=15 // pred_check
          %p130 = pneg %p51
        $region18: #{tpu_custom_call.1} parent=15 // pred_check_branch
          %132 = sbr.rel (%p130) target = $region20
        $region19: #{tpu_custom_call.1} parent=15 // pred_region
          %s133 = sand.u32 %s41, 1
          %s134 = scalar_lea.sflag [#allocation6], %s133
          %s135 = sand.u32 %s41, 1
          %s136 = smul.addr %s135, 8
          %s137 = scalar_lea.vmem [#allocation5], %s136
          %s139 = ssub.s32 128, 128
          %140 = vsyncadd %s134, %s139
          %s141 = smul.addr %s24, 4
          %s142 = sadd.s32 %s25, %s141
          %s143 = smul.addr %s142, 32
          %s144 = scalar_lea.hbm %s0, %s143
          %s145 = sshll.u32 %s137, 4
          %s146 = int_to_ptr.vmem [resolvable:$true] %s145
          %151 = dma.hbm_to_vmem [thread:$0]  %s144, 128, %s146, %s134, 32, 32, 2
        $region20: #{tpu_custom_call.1} parent=15 // pred_fallthru
          _
        // Predicated region
        $region21: #{tpu_custom_call.1} parent=15 // pred_check
          %p152 = pneg %p79
        $region22: #{tpu_custom_call.1} parent=15 // pred_check_branch
          %154 = sbr.rel (%p152) target = $region24
        $region23: #{tpu_custom_call.1} parent=15 // pred_region
          %s155 = sand.u32 %s69, 1
          %s156 = scalar_lea.sflag [#allocation9], %s155
          %s157 = sand.u32 %s69, 1
          %s158 = smul.addr %s157, 2
          %s159 = scalar_lea.vmem [#allocation8], %s158
          %s161 = ssub.s32 32, 32
          %162 = vsyncadd %s156, %s161
          %s163 = sadd.s32 %s25, %s24
          %s164 = smul.addr %s163, 32
          %s165 = scalar_lea.hbm %s1, %s164
          %s167 = sshll.u32 %s159, 4
          %s168 = int_to_ptr.vmem [resolvable:$true] %s167
          %170 = dma.hbm_to_vmem [thread:$0]  %s165, 32, %s168, %s156
        $region24: #{tpu_custom_call.1} parent=15 // pred_fallthru
          _
      $region16: #{tpu_custom_call.1} parent=5 // pred_fallthru
        _
      %p171 = scmp.le.s32.totalorder 1, %s17
      %p172 = scmp.lt.s32.totalorder %s17, 3
      %p173 = pnand %p171, %p172
      %p174 = pneg %p173
      // Predicated region
      $region25: #{tpu_custom_call.1} parent=5 // pred_check
        _
      $region26: #{tpu_custom_call.1} parent=5 // pred_check_branch
        %176 = sbr.rel (%p173) target = $region28
      $region27: #{tpu_custom_call.1} parent=5 // pred_region
        %s177 = ssub.s32 %s17, 1
        %s178 = sand.u32 %s44, 1
        %s179 = scalar_lea.sflag [#allocation6], %s178
        %s180 = sand.u32 %s44, 1
        %s181 = smul.addr %s180, 8
        %s182 = scalar_lea.vmem [#allocation5], %s181
        // Predicated region
        $region29: #{tpu_custom_call.1} parent=27 // pred_check
          %p183 = pneg %p57
        $region30: #{tpu_custom_call.1} parent=27 // pred_check_branch
          %185 = sbr.rel (%p183) target = $region32
        $region31: #{tpu_custom_call.1} parent=27 // pred_region
          %186 = dma.done %s179, 128
        $region32: #{tpu_custom_call.1} parent=27 // pred_fallthru
          _
        %s187 = sand.u32 %s72, 1
        %s188 = scalar_lea.sflag [#allocation9], %s187
        %s189 = sand.u32 %s72, 1
        %s190 = smul.addr %s189, 2
        %s191 = scalar_lea.vmem [#allocation8], %s190
        // Predicated region
        $region33: #{tpu_custom_call.1} parent=27 // pred_check
          %p192 = pneg %p85
        $region34: #{tpu_custom_call.1} parent=27 // pred_check_branch
          %194 = sbr.rel (%p192) target = $region36
        $region35: #{tpu_custom_call.1} parent=27 // pred_region
          %195 = dma.done %s188, 32
        $region36: #{tpu_custom_call.1} parent=27 // pred_fallthru
          _
        %s196 = sand.u32 %s44, 1
        %s197 = scalar_lea.sflag [#allocation6], %s196
        %s198 = sand.u32 %s44, 1
        %s199 = smul.addr %s198, 8
        %s200 = scalar_lea.vmem [#allocation5], %s199
        %p201 = pneg %p57
        %p202 = pneg %p54
        %s203 = sand.u32 %s72, 1
        %s204 = scalar_lea.sflag [#allocation9], %s203
        %s205 = sand.u32 %s72, 1
        %s206 = smul.addr %s205, 2
        %s207 = scalar_lea.vmem [#allocation8], %s206
        %p208 = pneg %p85
        %p209 = pneg %p82
        %p210 = pneg %p111
        %p211 = pneg %p108
        %s212 = sand.u32 %s98, 1
        %s213 = scalar_lea.sflag [#allocation7], %s212
        %s214 = sand.u32 %s98, 1
        %s215 = smul.addr %s214, 12
        %s216 = scalar_lea.vmem [#allocation10], %s215
        %p217 = scmp.eq.s32.totalorder %s27, 0
        // Predicated region
        $region37: #{tpu_custom_call.1} parent=27 // pred_check
          %p218 = pneg %p217
        $region38: #{tpu_custom_call.1} parent=27 // pred_check_branch
          %220 = sbr.rel (%p218) target = $region40
        $region39: #{tpu_custom_call.1} parent=27 // pred_region
          %221 = vst [vmem:[#allocation2] sm:$0x3] 0.0
          %222 = vst [vmem:[#allocation2 + $0x2] sm:$0x3] 0.0
          %223 = vst [vmem:[#allocation2 + $0x4] sm:$0x3] 0.0
          %224 = vst [vmem:[#allocation2 + $0x6] sm:$0x3] 0.0
          %225 = vst [vmem:[#allocation3] sm:$0x3] 0.0
          %226 = vst [vmem:[#allocation3 + $0x2] sm:$0x3] 0.0
          %227 = vst [vmem:[#allocation3 + $0x4] sm:$0x3] 0.0
          %228 = vst [vmem:[#allocation3 + $0x6] sm:$0x3] 0.0
          %229 = vst [vmem:[#allocation4] sm:$0x3] 0.0
          %230 = vst [vmem:[#allocation4 + $0x2] sm:$0x3] 0.0
          %231 = vst [vmem:[#allocation4 + $0x4] sm:$0x3] 0.0
          %232 = vst [vmem:[#allocation4 + $0x6] sm:$0x3] 0.0
        $region40: #{tpu_custom_call.1} parent=27 // pred_fallthru
          _
        %v233 = vld [vmem:[%s182] sm:$0x3]
        %v234 = vld [vmem:[%s182 + $0x2] sm:$0x3]
        %v235 = vld [vmem:[%s182 + $0x4] sm:$0x3]
        %v236 = vld [vmem:[%s182 + $0x6] sm:$0x3]
        %vm237 = vcmask 1041408
        %v238 = vsel %vm237, %v233, -inf
        %v239 = vsel %vm237, %v234, -inf
        %v240 = vsel %vm237, %v235, -inf
        %v241 = vsel %vm237, %v236, -inf
        %v242 = vmax.f32 %v238, %v239
        %v243 = vmax.f32 %v240, %v241
        %v244 = vmax.f32 %v242, %v243
        %v245 = vsub.f32 %v233, %v244
        %v246 = vsub.f32 %v234, %v244
        %v247 = vsub.f32 %v235, %v244
        %v248 = vsub.f32 %v236, %v244
        %v249 = vmul.f32 %v245, 1.442695
        %v250 = vpow.pop %v249
        %v251 = vmul.f32 %v246, 1.442695
        %v252 = vpow.pop %v251
        %v253 = vmul.f32 %v247, 1.442695
        %v254 = vpow.pop %v253
        %v255 = vmul.f32 %v248, 1.442695
        %v256 = vpow.pop %v255
        %v257 = vsel %vm237, %v250, 0.0
        %v258 = vsel %vm237, %v252, 0.0
        %v259 = vadd.f32 %v257, %v258
        %v260 = vsel %vm237, %v254, 0.0
        %v261 = vadd.f32 %v259, %v260
        %v262 = vsel %vm237, %v256, 0.0
        %v263 = vadd.f32 %v261, %v262
        %v264 = vrcp.pop %v263
        %v265 = vmul.f32 %v250, %v264
        %v266 = vmul.f32 %v252, %v264
        %v267 = vmul.f32 %v254, %v264
        %v268 = vmul.f32 %v256, %v264
        %v269 = vld [vmem:[%s191] sm:$0x3]
        %vm270 = vcmp.eq.s32.totalorder %v269, 0
        %vm271 = vcmp.eq.s32.totalorder %v269, 1
        %vm272 = vcmp.eq.s32.totalorder %v269, 2
        %vm273 = vcmp.eq.s32.totalorder %v269, 3
        %v274 = vsel %vm270, 1, 0
        %v275 = vsel %vm271, 1, 0
        %v276 = vsel %vm272, 1, 0
        %v277 = vsel %vm273, 1, 0
        %v278 = vcvt.s32.f32 %v274
        %v279 = vcvt.s32.f32 %v275
        %v280 = vcvt.s32.f32 %v276
        %v281 = vcvt.s32.f32 %v277
        %v282 = vld [vmem:[#allocation2] sm:$0x3]
        %v283 = vld [vmem:[#allocation2 + $0x2] sm:$0x3]
        %v284 = vld [vmem:[#allocation2 + $0x4] sm:$0x3]
        %v285 = vld [vmem:[#allocation2 + $0x6] sm:$0x3]
        %v286 = vmul.f32 %v265, %v278
        %v287 = vmul.f32 %v266, %v279
        %v288 = vmul.f32 %v267, %v280
        %v289 = vmul.f32 %v268, %v281
        %v290 = vadd.f32 %v282, %v286
        %v291 = vadd.f32 %v283, %v287
        %v292 = vadd.f32 %v284, %v288
        %v293 = vadd.f32 %v285, %v289
        %294 = vst [vmem:[#allocation2] sm:$0x3] %v290
        %295 = vst [vmem:[#allocation2 + $0x2] sm:$0x3] %v291
        %296 = vst [vmem:[#allocation2 + $0x4] sm:$0x3] %v292
        %297 = vst [vmem:[#allocation2 + $0x6] sm:$0x3] %v293
        %v298 = vld [vmem:[#allocation4] sm:$0x3]
        %v299 = vld [vmem:[#allocation4 + $0x2] sm:$0x3]
        %v300 = vld [vmem:[#allocation4 + $0x4] sm:$0x3]
        %v301 = vld [vmem:[#allocation4 + $0x6] sm:$0x3]
        %v302 = vadd.f32 %v298, %v278
        %v303 = vadd.f32 %v299, %v279
        %v304 = vadd.f32 %v300, %v280
        %v305 = vadd.f32 %v301, %v281
        %306 = vst [vmem:[#allocation4] sm:$0x3] %v302
        %307 = vst [vmem:[#allocation4 + $0x2] sm:$0x3] %v303
        %308 = vst [vmem:[#allocation4 + $0x4] sm:$0x3] %v304
        %309 = vst [vmem:[#allocation4 + $0x6] sm:$0x3] %v305
        %v310 = vld [vmem:[#allocation3] sm:$0x3]
        %v311 = vld [vmem:[#allocation3 + $0x2] sm:$0x3]
        %v312 = vld [vmem:[#allocation3 + $0x4] sm:$0x3]
        %v313 = vld [vmem:[#allocation3 + $0x6] sm:$0x3]
        %v314 = vadd.f32 %v310, %v265
        %v315 = vadd.f32 %v311, %v266
        %v316 = vadd.f32 %v312, %v267
        %v317 = vadd.f32 %v313, %v268
        %318 = vst [vmem:[#allocation3] sm:$0x3] %v314
        %319 = vst [vmem:[#allocation3 + $0x2] sm:$0x3] %v315
        %320 = vst [vmem:[#allocation3 + $0x4] sm:$0x3] %v316
        %321 = vst [vmem:[#allocation3 + $0x6] sm:$0x3] %v317
        // Predicated region
        $region41: #{tpu_custom_call.1} parent=27 // pred_check
          %p322 = pneg %p217
        $region42: #{tpu_custom_call.1} parent=27 // pred_check_branch
          %324 = sbr.rel (%p322) target = $region44
        $region43: #{tpu_custom_call.1} parent=27 // pred_region
          %v325 = vld [vmem:[#allocation2] sm:$0x3]
          %v326 = vld [vmem:[#allocation2 + $0x2] sm:$0x3]
          %v327 = vld [vmem:[#allocation2 + $0x4] sm:$0x3]
          %v328 = vld [vmem:[#allocation2 + $0x6] sm:$0x3]
          %v329 = vsel %vm237, %v325, 0.0
          %v330 = vrot.slane %v329, 4
          %v331 = vadd.f32 %v329, %v330
          %v332 = vrot.slane %v331, 2
          %v333 = vadd.f32 %v331, %v332
          %v334 = vrot.slane %v333, 1
          %v335 = vadd.f32 %v333, %v334
          %v336 = vsel %vm237, %v326, 0.0
          %v337 = vrot.slane %v336, 4
          %v338 = vadd.f32 %v336, %v337
          %v339 = vrot.slane %v338, 2
          %v340 = vadd.f32 %v338, %v339
          %v341 = vrot.slane %v340, 1
          %v342 = vadd.f32 %v340, %v341
          %v343 = vsel %vm237, %v327, 0.0
          %v344 = vrot.slane %v343, 4
          %v345 = vadd.f32 %v343, %v344
          %v346 = vrot.slane %v345, 2
          %v347 = vadd.f32 %v345, %v346
          %v348 = vrot.slane %v347, 1
          %v349 = vadd.f32 %v347, %v348
          %v350 = vsel %vm237, %v328, 0.0
          %v351 = vrot.slane %v350, 4
          %v352 = vadd.f32 %v350, %v351
          %v353 = vrot.slane %v352, 2
          %v354 = vadd.f32 %v352, %v353
          %v355 = vrot.slane %v354, 1
          %v356 = vadd.f32 %v354, %v355
          %vm361 = vcmask 1041409
          %v362 = vsel %vm361, %v342, %v335
          %vm363 = vcmask 1042434
          %v364 = vsel %vm363, %v349, %v362
          %vm365 = vcmask 1043459
          %v366 = vsel %vm365, %v356, %v364
          %368 = vst [vmem:[%s216] sm:$0xf] %v366
          %v369 = vld [vmem:[#allocation3] sm:$0x3]
          %v370 = vld [vmem:[#allocation3 + $0x2] sm:$0x3]
          %v371 = vld [vmem:[#allocation3 + $0x4] sm:$0x3]
          %v372 = vld [vmem:[#allocation3 + $0x6] sm:$0x3]
          %v373 = vsel %vm237, %v369, 0.0
          %v374 = vrot.slane %v373, 4
          %v375 = vadd.f32 %v373, %v374
          %v376 = vrot.slane %v375, 2
          %v377 = vadd.f32 %v375, %v376
          %v378 = vrot.slane %v377, 1
          %v379 = vadd.f32 %v377, %v378
          %v380 = vsel %vm237, %v370, 0.0
          %v381 = vrot.slane %v380, 4
          %v382 = vadd.f32 %v380, %v381
          %v383 = vrot.slane %v382, 2
          %v384 = vadd.f32 %v382, %v383
          %v385 = vrot.slane %v384, 1
          %v386 = vadd.f32 %v384, %v385
          %v387 = vsel %vm237, %v371, 0.0
          %v388 = vrot.slane %v387, 4
          %v389 = vadd.f32 %v387, %v388
          %v390 = vrot.slane %v389, 2
          %v391 = vadd.f32 %v389, %v390
          %v392 = vrot.slane %v391, 1
          %v393 = vadd.f32 %v391, %v392
          %v394 = vsel %vm237, %v372, 0.0
          %v395 = vrot.slane %v394, 4
          %v396 = vadd.f32 %v394, %v395
          %v397 = vrot.slane %v396, 2
          %v398 = vadd.f32 %v396, %v397
          %v399 = vrot.slane %v398, 1
          %v400 = vadd.f32 %v398, %v399
          %v405 = vsel %vm361, %v386, %v379
          %v406 = vsel %vm363, %v393, %v405
          %v407 = vsel %vm365, %v400, %v406
          %s409 = scalar_lea.vmem %s216, 4 [#allocation10]
          %410 = vst [vmem:[%s409] sm:$0xf] %v407
          %v411 = vld [vmem:[#allocation4] sm:$0x3]
          %v412 = vld [vmem:[#allocation4 + $0x2] sm:$0x3]
          %v413 = vld [vmem:[#allocation4 + $0x4] sm:$0x3]
          %v414 = vld [vmem:[#allocation4 + $0x6] sm:$0x3]
          %v415 = vsel %vm237, %v411, 0.0
          %v416 = vrot.slane %v415, 4
          %v417 = vadd.f32 %v415, %v416
          %v418 = vrot.slane %v417, 2
          %v419 = vadd.f32 %v417, %v418
          %v420 = vrot.slane %v419, 1
          %v421 = vadd.f32 %v419, %v420
          %v422 = vsel %vm237, %v412, 0.0
          %v423 = vrot.slane %v422, 4
          %v424 = vadd.f32 %v422, %v423
          %v425 = vrot.slane %v424, 2
          %v426 = vadd.f32 %v424, %v425
          %v427 = vrot.slane %v426, 1
          %v428 = vadd.f32 %v426, %v427
          %v429 = vsel %vm237, %v413, 0.0
          %v430 = vrot.slane %v429, 4
          %v431 = vadd.f32 %v429, %v430
          %v432 = vrot.slane %v431, 2
          %v433 = vadd.f32 %v431, %v432
          %v434 = vrot.slane %v433, 1
          %v435 = vadd.f32 %v433, %v434
          %v436 = vsel %vm237, %v414, 0.0
          %v437 = vrot.slane %v436, 4
          %v438 = vadd.f32 %v436, %v437
          %v439 = vrot.slane %v438, 2
          %v440 = vadd.f32 %v438, %v439
          %v441 = vrot.slane %v440, 1
          %v442 = vadd.f32 %v440, %v441
          %v447 = vsel %vm361, %v428, %v421
          %v448 = vsel %vm363, %v435, %v447
          %v449 = vsel %vm365, %v442, %v448
          %s451 = scalar_lea.vmem %s216, 8 [#allocation10]
          %452 = vst [vmem:[%s451] sm:$0xf] %v449
        $region44: #{tpu_custom_call.1} parent=27 // pred_fallthru
          _
        %s453 = sand.u32 %s98, 1
        %s454 = scalar_lea.sflag [#allocation7], %s453
        %s455 = sand.u32 %s98, 1
        %s456 = smul.addr %s455, 12
        %s457 = scalar_lea.vmem [#allocation10], %s456
        // Predicated region
        $region45: #{tpu_custom_call.1} parent=27 // pred_check
          %p458 = pneg %p108
        $region46: #{tpu_custom_call.1} parent=27 // pred_check_branch
          %460 = sbr.rel (%p458) target = $region48
        $region47: #{tpu_custom_call.1} parent=27 // pred_region
          %s462 = ssub.s32 192, 192
          %463 = vsyncadd %s454, %s462
          %s464 = smul.addr %s26, 3
          %s465 = smul.addr %s464, 64
          %s466 = scalar_lea.hbm %s2, %s465
          %s467 = sshll.u32 %s457, 4
          %s468 = int_to_ptr.vmem [resolvable:$true] %s467
          %473 = dma.vmem_to_hbm [thread:$0]  %s468, 192, %s466, %s454, 64, 64, 4
        $region48: #{tpu_custom_call.1} parent=27 // pred_fallthru
          _
      $region28: #{tpu_custom_call.1} parent=5 // pred_fallthru
        _
      %p474 = scmp.le.s32.totalorder 2, %s17
      // Predicated region
      $region49: #{tpu_custom_call.1} parent=5 // pred_check
        %p475 = pneg %p474
      $region50: #{tpu_custom_call.1} parent=5 // pred_check_branch
        %477 = sbr.rel (%p475) target = $region52
      $region51: #{tpu_custom_call.1} parent=5 // pred_region
        %s478 = ssub.s32 %s17, 2
        // Predicated region
        $region53: #{tpu_custom_call.1} parent=51 // pred_check
          %p479 = pneg %p114
        $region54: #{tpu_custom_call.1} parent=51 // pred_check_branch
          %481 = sbr.rel (%p479) target = $region56
        $region55: #{tpu_custom_call.1} parent=51 // pred_region
          %s482 = sand.u32 %s99, 1
          %s483 = scalar_lea.sflag [#allocation7], %s482
          %s484 = sand.u32 %s99, 1
          %s485 = smul.addr %s484, 12
          %s486 = scalar_lea.vmem [#allocation10], %s485
          %487 = dma.done %s483, 192
        $region56: #{tpu_custom_call.1} parent=51 // pred_fallthru
          _
      $region52: #{tpu_custom_call.1} parent=5 // pred_fallthru
        _
    $region6: #{tpu_custom_call.1} parent=1 // loop_footer
      %s21 = sadd.s32 1, %s17
    $region7: #{tpu_custom_call.1} parent=1 // loop_footer_branch
      %16 = sbr.rel target = $region3
    $region8: #{tpu_custom_call.1} parent=1 // loop_exit
      _
    %488 = vsyncpa [#allocation6], 1
    %s489 = scalar_lea.sflag [#allocation6], 1
    %490 = vsyncpa %s489, 1
    %491 = vsyncpa [#allocation9], 1
    %s492 = scalar_lea.sflag [#allocation9], 1
    %493 = vsyncpa %s492, 1
    %494 = vsyncpa [#allocation7], 1
    %s495 = scalar_lea.sflag [#allocation7], 1
    %496 = vsyncpa %s495, 1

</llo_original>
